<compile_context>
chip_gen: v7x
topology: tpu7x:2x2x1
jax: 0.10.0
libtpu: 0.0.40
codegen_flags: <defaults>
</compile_context>

<pallas_src>
import functools
import math

import jax
import jax.numpy as jnp
from jax.experimental import pallas as pl
from jax.experimental.pallas import tpu as pltpu

_NEG_LOG_1E4 = -math.log(1e-4)   # == -log(one-hot clip lower bound), used by rce


def _sce_kernel(pred_ref, labels_ref, out_ref, *, alpha, beta):
    # pred_ref: (T, C) logits, labels_ref: (T, 1) int32, out_ref: (1, 1, T) f32
    logits = pred_ref[...].astype(jnp.float32)
    labels = labels_ref[...]                                   # (T, 1)

    # Numerically-stable softmax pieces (exp is the only (T, C) EUP work).
    m = jnp.max(logits, axis=1, keepdims=True)                 # (T, 1)
    shifted = logits - m                                       # (T, C)
    exps = jnp.exp(shifted)                                    # (T, C)
    sumexp = jnp.sum(exps, axis=1, keepdims=True)              # (T, 1)

    is_label = (
        jax.lax.broadcasted_iota(jnp.int32, logits.shape, 1) == labels)  # (T, C)

    # Cross entropy: -log_softmax[label] = log(sumexp) - shifted[label].
    label_shift = jnp.sum(jnp.where(is_label, shifted, 0.0),
                          axis=1, keepdims=True)               # (T, 1)
    ce = jnp.log(sumexp) - label_shift                         # (T, 1)

    # Reverse CE, closed form:
    #   log(clip(onehot, 1e-4, 1)) = 0 at label, log(1e-4) elsewhere
    #   rce = -log(1e-4) * (sum(p_clip) - p_clip[label])
    # Exact reciprocal: it is only (T, 1) data (off the (T, C) critical path),
    # and exactness keeps the 1e-5 reference check safe.
    inv = pl.reciprocal(sumexp, approx=False)                  # (T, 1)
    probs = jnp.maximum(exps * inv, 1e-7)                      # (T, C); upper clamp redundant
    p_sum = jnp.sum(probs, axis=1, keepdims=True)              # (T, 1)
    # p_clip[label] from the already-extracted shifted[label] (no second (T,C) pass):
    p_lab = jnp.maximum(jnp.exp(label_shift) * inv, 1e-7)      # (T, 1)
    rce = _NEG_LOG_1E4 * (p_sum - p_lab)                       # (T, 1)

    loss = alpha * ce + beta * rce                             # (T, 1)
    # Lane-dense store: (T, 1) column -> (1, 1, T) row (cheap small relayout;
    # avoids masked one-lane stores and a strided writeback DMA).
    out_ref[...] = loss.reshape(out_ref.shape)


def _round_up(x, m):
    return ((x + m - 1) // m) * m


def sce_loss(pred, labels, *, alpha, beta, num_classes, tile_n=None):
    """pred: (N, C) float logits; labels: (N,) int. Returns (N,) float32 loss."""
    n, c = pred.shape
    assert c == num_classes

    if tile_n is None:
        # Keep one pred block <= ~2 MiB f32 so (2 inputs x 2 double-buffers + out)
        # stays far under v7x's 32 MiB scoped-VMEM default (64 MiB physical),
        # while still amortizing per-grid-step overhead on v5e/v6e.
        rows_for_budget = max(8, (2 * 1024 * 1024) // (4 * c))
        tile_n = max(8, min(1024, rows_for_budget, _round_up(n, 8)) // 8 * 8)
    assert tile_n % 8 == 0 and tile_n > 0

    n_tiles = pl.cdiv(n, tile_n)
    n_pad = n_tiles * tile_n

    labels2d = labels.astype(jnp.int32).reshape(n, 1)
    if n_pad != n:  # pad edge rows (finite garbage loss), sliced off below
        pred = jnp.pad(pred, ((0, n_pad - n), (0, 0)))
        labels2d = jnp.pad(labels2d, ((0, n_pad - n), (0, 0)))

    # TODO(synk): for vocab-scale num_classes (>= ~8K) add a second "arbitrary"
    # grid axis over C with online-softmax accumulators so VMEM stays flat in C.
    out = pl.pallas_call(
        functools.partial(_sce_kernel, alpha=float(alpha), beta=float(beta)),
        out_shape=jax.ShapeDtypeStruct((n_tiles, 1, tile_n), jnp.float32),
        grid=(n_tiles,),
        in_specs=[
            pl.BlockSpec((tile_n, c), lambda i: (i, 0)),
            pl.BlockSpec((tile_n, 1), lambda i: (i, 0)),
        ],
        out_specs=pl.BlockSpec((1, 1, tile_n), lambda i: (i, 0, 0)),
        compiler_params=pltpu.CompilerParams(
            dimension_semantics=("parallel",)),  # rows independent -> 2 TCs on v7x
    )(pred, labels2d)
    return out.reshape(n_pad)[:n]


def _sce_ref(pred, labels, *, alpha, beta, num_classes):
    """Pure-JAX reference mirroring the PyTorch module."""
    logits = pred.astype(jnp.float32)
    logp = jax.nn.log_softmax(logits, axis=1)
    oh = jax.nn.one_hot(labels, num_classes, dtype=jnp.float32)
    ce = -jnp.sum(oh * logp, axis=1)
    p = jnp.clip(jax.nn.softmax(logits, axis=1), 1e-7, 1.0)
    rce = -jnp.sum(p * jnp.log(jnp.clip(oh, 1e-4, 1.0)), axis=1)
    return alpha * ce + beta * rce


if __name__ == "__main__":
    key = jax.random.PRNGKey(0)
    k1, k2 = jax.random.split(key)

    batch = 20           # deliberately not a multiple of the small tile -> exercises padding
    num_classes = 10
    alpha, beta = 0.1, 1.0

    pred = jax.random.normal(k1, (batch, num_classes), dtype=jnp.float32)
    labels = jax.random.randint(k2, (batch,), 0, num_classes, dtype=jnp.int32)

    ref = _sce_ref(pred, labels, alpha=alpha, beta=beta, num_classes=num_classes)

    # Multi-tile path: tile_n=8 -> grid of 3 steps with a padded edge tile.
    loss_tiled = sce_loss(pred, labels, alpha=alpha, beta=beta,
                          num_classes=num_classes, tile_n=8)
    jax.block_until_ready(loss_tiled)
    assert loss_tiled.shape == (batch,)
    assert jnp.allclose(loss_tiled, ref, rtol=1e-5, atol=1e-5), (loss_tiled, ref)

    # Default auto-sized tile path (single tile at this batch size).
    loss_auto = sce_loss(pred, labels, alpha=alpha, beta=beta,
                         num_classes=num_classes)
    jax.block_until_ready(loss_auto)
    assert jnp.allclose(loss_auto, ref, rtol=1e-5, atol=1e-5), (loss_auto, ref)

    print("KERNEL_OK")
</pallas_src>

<mosaic_0001>
module attributes {stable_mosaic.version = 11 : i64} {
  func.func @_sce_kernel(%arg0: i32, %arg1: memref<8x10xf32, #tpu.memory_space<vmem>>, %arg2: memref<8x1xi32, #tpu.memory_space<vmem>>, %arg3: memref<1x1x8xf32, #tpu.memory_space<vmem>>) attributes {dimension_semantics = [#tpu.dimension_semantics<parallel>], iteration_bounds = array<i64: 3>, scalar_prefetch = 0 : i64, scratch_operands = 0 : i64, tpu.core_type = #tpu.core_type<tc>, window_params = [{transform_indices = @transform_0, window_bounds = array<i64: 8, 10>}, {transform_indices = @transform_1, window_bounds = array<i64: 8, 1>}, {transform_indices = @transform_2, window_bounds = array<i64: 1, 1, 8>}]} {
    %c0 = arith.constant 0 : index
    %c0_0 = arith.constant 0 : index
    %0 = vector.load %arg1[%c0, %c0_0] : memref<8x10xf32, #tpu.memory_space<vmem>>, vector<8x10xf32>
    %c0_1 = arith.constant 0 : index
    %c0_2 = arith.constant 0 : index
    %1 = vector.load %arg2[%c0_1, %c0_2] : memref<8x1xi32, #tpu.memory_space<vmem>>, vector<8x1xi32>
    %cst = arith.constant dense<0xFF800000> : vector<8xf32>
    %2 = vector.multi_reduction <maximumf>, %0, %cst [1] : vector<8x10xf32> to vector<8xf32>
    %3 = vector.shape_cast %2 : vector<8xf32> to vector<8x1xf32>
    %4 = vector.broadcast %3 : vector<8x1xf32> to vector<8x10xf32>
    %5 = arith.subf %0, %4 : vector<8x10xf32>
    %6 = math.exp %5 : vector<8x10xf32>
    %cst_3 = arith.constant dense<0.000000e+00> : vector<8xf32>
    %7 = vector.multi_reduction <add>, %6, %cst_3 [1] : vector<8x10xf32> to vector<8xf32>
    %8 = vector.shape_cast %7 : vector<8xf32> to vector<8x1xf32>
    %9 = tpu.iota {dimensions = array<i32: 1>} : vector<8x10xi32>
    %10 = vector.broadcast %1 : vector<8x1xi32> to vector<8x10xi32>
    %11 = arith.cmpi eq, %9, %10 : vector<8x10xi32>
    %cst_4 = arith.constant 0.000000e+00 : f32
    %12 = vector.broadcast %cst_4 : f32 to vector<8x10xf32>
    %13 = arith.select %11, %5, %12 : vector<8x10xi1>, vector<8x10xf32>
    %cst_5 = arith.constant dense<0.000000e+00> : vector<8xf32>
    %14 = vector.multi_reduction <add>, %13, %cst_5 [1] : vector<8x10xf32> to vector<8xf32>
    %15 = vector.shape_cast %14 : vector<8xf32> to vector<8x1xf32>
    %16 = math.log %8 : vector<8x1xf32>
    %17 = arith.subf %16, %15 : vector<8x1xf32>
    %18 = tpu.reciprocal %8 : vector<8x1xf32> -> vector<8x1xf32>
    %19 = vector.broadcast %18 : vector<8x1xf32> to vector<8x10xf32>
    %20 = arith.mulf %6, %19 : vector<8x10xf32>
    %cst_6 = arith.constant 1.000000e-07 : f32
    %21 = vector.broadcast %cst_6 : f32 to vector<8x10xf32>
    %22 = arith.maximumf %20, %21 : vector<8x10xf32>
    %cst_7 = arith.constant dense<0.000000e+00> : vector<8xf32>
    %23 = vector.multi_reduction <add>, %22, %cst_7 [1] : vector<8x10xf32> to vector<8xf32>
    %24 = vector.shape_cast %23 : vector<8xf32> to vector<8x1xf32>
    %25 = math.exp %15 : vector<8x1xf32>
    %26 = arith.mulf %25, %18 : vector<8x1xf32>
    %cst_8 = arith.constant 1.000000e-07 : f32
    %27 = vector.broadcast %cst_8 : f32 to vector<8x1xf32>
    %28 = arith.maximumf %26, %27 : vector<8x1xf32>
    %29 = arith.subf %24, %28 : vector<8x1xf32>
    %cst_9 = arith.constant 9.21034049 : f32
    %30 = vector.broadcast %cst_9 : f32 to vector<8x1xf32>
    %31 = arith.mulf %30, %29 : vector<8x1xf32>
    %cst_10 = arith.constant 1.000000e-01 : f32
    %32 = vector.broadcast %cst_10 : f32 to vector<8x1xf32>
    %33 = arith.mulf %32, %17 : vector<8x1xf32>
    %cst_11 = arith.constant 1.000000e+00 : f32
    %34 = vector.broadcast %cst_11 : f32 to vector<8x1xf32>
    %35 = arith.mulf %34, %31 : vector<8x1xf32>
    %36 = arith.addf %33, %35 : vector<8x1xf32>
    %37 = vector.shape_cast %36 : vector<8x1xf32> to vector<1x1x8xf32>
    %c0_12 = arith.constant 0 : index
    %c0_13 = arith.constant 0 : index
    %c0_14 = arith.constant 0 : index
    %38 = vector.load %arg3[%c0_12, %c0_13, %c0_14] : memref<1x1x8xf32, #tpu.memory_space<vmem>>, vector<1x1x8xf32>
    tpu.vector_store %arg3[%c0_12, %c0_13, %c0_14], %37 {strides = array<i32>} : memref<1x1x8xf32, #tpu.memory_space<vmem>>, vector<1x1x8xf32>,
    return
  }
  func.func @transform_0(%arg0: i32) -> (i32, i32) {
    %c0_i32 = arith.constant 0 : i32
    %c0_i32_0 = arith.constant 0 : i32
    return %arg0, %c0_i32 : i32, i32
  }
  func.func @transform_1(%arg0: i32) -> (i32, i32) {
    %c0_i32 = arith.constant 0 : i32
    %c0_i32_0 = arith.constant 0 : i32
    return %arg0, %c0_i32 : i32, i32
  }
  func.func @transform_2(%arg0: i32) -> (i32, i32, i32) {
    %c0_i32 = arith.constant 0 : i32
    %c0_i32_0 = arith.constant 0 : i32
    %c0_i32_1 = arith.constant 0 : i32
    return %arg0, %c0_i32, %c0_i32_0 : i32, i32, i32
  }
}

</mosaic_0001>

<llo_original>
// kernel: tpu_custom_call.1
$region0: #{tpu_custom_call.1}
  #allocation0 [shape = 'u32[]', space=smem, size = 0x4, offset = 0x4, fixed_abs, tag = 'smem constant byte address 0x4 - core index']
  #allocation1 [shape = 'u32[144,128]{1,0:T(1,128)}', space=vmem, size = 0x12000, scoped, tag = 'internal scratch']
  %s0 = inlined_call_operand.vmem [shape: f32[24,10], index: 0, kind: input, shape index: {}]
  %s1 = inlined_call_operand.vmem [shape: s32[24,1], index: 1, kind: input, shape index: {}]
  %s2 = inlined_call_operand.hbm [shape: f32[3,1,8], index: 2, kind: output, shape index: {}]
  %s3 = sld [smem:[#allocation0]]
  $region41: #{tpu_custom_call.1} parent=0
    _
  %s5 = ssub.s32 1, %s3
  %s6 = scalar_select 0, %s5, %s3
  $region1: #{tpu_custom_call.1} parent=0
    #allocation2 [shape = 'u8[1024]{0}', space=vmem, size = 0x400, scoped, tag = 'output window, operand 0']
    #allocation3 [shape = 's32[2]{0}', space=sflag, size = 0x8, scoped, tag = 'scoped memory for tpu_custom_call.1']
    %7 = vsyncpa [#allocation3], 0
    %s8 = scalar_lea.sflag [#allocation3], 1
    %9 = vsyncpa %s8, 0
    loop: start=0, step=1, limit=5
    $region2: #{tpu_custom_call.1} parent=1 // loop_pre_header
      _
    $region3: #{tpu_custom_call.1} parent=1 // loop_header
      %s11 = sphi 0, %s15
      %p12 = scmp.ge.s32.totalorder %s11, 5
      %s21 = sphi 0, %s23
      %s24 = sphi 0, %s21
      %s25 = sphi 0, %s24
      %s41 = sphi 0, %s25
      %s47 = sphi 0, %s49
      %s50 = sphi 0, %s47
      %s51 = sphi 0, %s50
      %s67 = sphi 0, %s51
      %s73 = sphi 0, %s75
      %s76 = sphi 0, %s73
      %s77 = sphi 0, %s76
      %s93 = sphi 0, %s77
    $region4: #{tpu_custom_call.1} parent=1 // loop_header_branch
      %14 = sbr.rel (%p12) target = $region8
    $region5: #{tpu_custom_call.1} parent=1 // loop_body
      %s16 = ssub.s32 %s11, 1
      %s17 = ssub.s32 %s11, 2
      %s18 = sadd.s32 %s11, 1
      %s19 = ssub.s32 %s11, %s18
      %p20 = scmp.eq.s32.totalorder %s19, 0
      %s22 = sadd.s32 %s21, 1
      %s23 = scalar_select %p20, %s21, %s22
      %p26 = pneg %p20
      %p27 = scmp.eq.s32.totalorder %s11, 2
      %p28 = por %p26, %p27
      %p29 = scmp.ne.s32.totalorder %s21, %s24
      %p30 = scmp.eq.s32.totalorder %s11, 0
      %p31 = por %p29, %p30
      %p32 = scmp.ne.s32.totalorder %s21, %s24
      %p33 = scmp.eq.s32.totalorder %s16, 2
      %p34 = por %p32, %p33
      %p35 = scmp.ne.s32.totalorder %s24, %s25
      %p36 = scmp.eq.s32.totalorder %s16, 0
      %p37 = por %p35, %p36
      %p38 = scmp.ne.s32.totalorder %s24, %s25
      %p39 = scmp.eq.s32.totalorder %s17, 2
      %p40 = por %p38, %p39
      %p42 = scmp.ne.s32.totalorder %s25, %s41
      %p43 = scmp.eq.s32.totalorder %s17, 0
      %p44 = por %p42, %p43
      %s45 = ssub.s32 %s11, %s18
      %p46 = scmp.eq.s32.totalorder %s45, 0
      %s48 = sadd.s32 %s47, 1
      %s49 = scalar_select %p46, %s47, %s48
      %p52 = pneg %p46
      %p53 = scmp.eq.s32.totalorder %s11, 2
      %p54 = por %p52, %p53
      %p55 = scmp.ne.s32.totalorder %s47, %s50
      %p56 = scmp.eq.s32.totalorder %s11, 0
      %p57 = por %p55, %p56
      %p58 = scmp.ne.s32.totalorder %s47, %s50
      %p59 = scmp.eq.s32.totalorder %s16, 2
      %p60 = por %p58, %p59
      %p61 = scmp.ne.s32.totalorder %s50, %s51
      %p62 = scmp.eq.s32.totalorder %s16, 0
      %p63 = por %p61, %p62
      %p64 = scmp.ne.s32.totalorder %s50, %s51
      %p65 = scmp.eq.s32.totalorder %s17, 2
      %p66 = por %p64, %p65
      %p68 = scmp.ne.s32.totalorder %s51, %s67
      %p69 = scmp.eq.s32.totalorder %s17, 0
      %p70 = por %p68, %p69
      %s71 = ssub.s32 %s11, %s18
      %p72 = scmp.eq.s32.totalorder %s71, 0
      %s74 = sadd.s32 %s73, 1
      %s75 = scalar_select %p72, %s73, %s74
      %p78 = pneg %p72
      %p79 = scmp.eq.s32.totalorder %s11, 2
      %p80 = por %p78, %p79
      %p81 = scmp.ne.s32.totalorder %s73, %s76
      %p82 = scmp.eq.s32.totalorder %s11, 0
      %p83 = por %p81, %p82
      %p84 = scmp.ne.s32.totalorder %s73, %s76
      %p85 = scmp.eq.s32.totalorder %s16, 2
      %p86 = por %p84, %p85
      %p87 = scmp.ne.s32.totalorder %s76, %s77
      %p88 = scmp.eq.s32.totalorder %s16, 0
      %p89 = por %p87, %p88
      %p90 = scmp.ne.s32.totalorder %s76, %s77
      %p91 = scmp.eq.s32.totalorder %s17, 2
      %p92 = por %p90, %p91
      %p94 = scmp.ne.s32.totalorder %s77, %s93
      %p95 = scmp.eq.s32.totalorder %s17, 0
      %p96 = por %p94, %p95
      %p97 = scmp.le.s32.totalorder 1, %s11
      %p98 = scmp.lt.s32.totalorder %s11, 4
      %p99 = pnand %p97, %p98
      %p100 = pneg %p99
      // Predicated region
      $region9: #{tpu_custom_call.1} parent=5 // pred_check
        _
      $region10: #{tpu_custom_call.1} parent=5 // pred_check_branch
        %102 = sbr.rel (%p99) target = $region12
      $region11: #{tpu_custom_call.1} parent=5 // pred_region
        %s103 = ssub.s32 %s11, 1
      $region12: #{tpu_custom_call.1} parent=5 // pred_fallthru
        _
      %p104 = scmp.lt.s32.totalorder %s11, 3
      // Predicated region
      $region13: #{tpu_custom_call.1} parent=5 // pred_check
        %p105 = pneg %p104
      $region14: #{tpu_custom_call.1} parent=5 // pred_check_branch
        %107 = sbr.rel (%p105) target = $region16
      $region15: #{tpu_custom_call.1} parent=5 // pred_region
        // Predicated region
        $region17: #{tpu_custom_call.1} parent=15 // pred_check
          %p108 = pneg %p31
        $region18: #{tpu_custom_call.1} parent=15 // pred_check_branch
          %110 = sbr.rel (%p108) target = $region20
        $region19: #{tpu_custom_call.1} parent=15 // pred_region
          %p111 = scmp.lt.s32.totalorder %s11, 2
          %s112 = scalar_select %p111, %s11, 2
          %s113 = smul.addr %s112, 8
          %s114 = scalar_lea.vmem %s0, %s113
        $region20: #{tpu_custom_call.1} parent=15 // pred_fallthru
          _
        // Predicated region
        $region21: #{tpu_custom_call.1} parent=15 // pred_check
          %p115 = pneg %p57
        $region22: #{tpu_custom_call.1} parent=15 // pred_check_branch
          %117 = sbr.rel (%p115) target = $region24
        $region23: #{tpu_custom_call.1} parent=15 // pred_region
          %p118 = scmp.lt.s32.totalorder %s11, 2
          %s119 = scalar_select %p118, %s11, 2
          %s120 = smul.addr %s119, 8
          %s121 = scalar_lea.vmem %s1, %s120
        $region24: #{tpu_custom_call.1} parent=15 // pred_fallthru
          _
      $region16: #{tpu_custom_call.1} parent=5 // pred_fallthru
        _
      %p122 = scmp.le.s32.totalorder 1, %s11
      %p123 = scmp.lt.s32.totalorder %s11, 4
      %p124 = pnand %p122, %p123
      %p125 = pneg %p124
      // Predicated region
      $region25: #{tpu_custom_call.1} parent=5 // pred_check
        _
      $region26: #{tpu_custom_call.1} parent=5 // pred_check_branch
        %127 = sbr.rel (%p124) target = $region28
      $region27: #{tpu_custom_call.1} parent=5 // pred_region
        %s128 = ssub.s32 %s11, 1
        %p129 = scmp.lt.s32.totalorder %s16, 2
        %s130 = scalar_select %p129, %s16, 2
        %s131 = smul.addr %s130, 8
        %s132 = scalar_lea.vmem %s0, %s131
        %p133 = pneg %p37
        %p134 = pneg %p34
        %p135 = scmp.lt.s32.totalorder %s16, 2
        %s136 = scalar_select %p135, %s16, 2
        %s137 = smul.addr %s136, 8
        %s138 = scalar_lea.vmem %s1, %s137
        %p139 = pneg %p63
        %p140 = pneg %p60
        %p141 = pneg %p89
        %p142 = pneg %p86
        %s143 = sand.u32 %s76, 1
        %s144 = scalar_lea.sflag [#allocation3], %s143
        %s145 = sand.u32 %s76, 1
        %s146 = scalar_lea.vmem [#allocation2], %s145
        %p147 = scmp.lt.s32.totalorder %s16, 2
        %s148 = scalar_select %p147, %s16, 2
        %s149 = smul.addr %s148, 8
        %s150 = scalar_lea.vmem %s0, %s149
        %p151 = scmp.lt.s32.totalorder %s16, 2
        %s152 = scalar_select %p151, %s16, 2
        %s153 = smul.addr %s152, 8
        %s154 = scalar_lea.vmem %s1, %s153
        %v155 = vld [vmem:[%s150] sm:$0xff]
        %v156 = vld [vmem:[%s154] sm:$0xff]
        %vm157 = vcmask 80896
        %v158 = vsel %vm157, %v155, -inf
        %159 = vmax.xlane.f32.xlu0 %v158
        %v160 = vpop.xlane.xlu0 %159
        %v161 = vsub.f32 %v155, %v160
        %v162 = vmul.f32 %v161, 1.442695
        %v163 = vpow.pop %v162
        %v164 = vsel %vm157, %v163, 0.0
        %165 = vadd.xlane.f32.xlu0 %v164
        %v166 = vpop.xlane.xlu0 %165
        %v167 = vlaneseq
        %v168 = vand.u32 %v167, 127
        %169 = vset.pattern.permute.xlu0 0
        %170 = vperm.xlu0 %169, %v156
        %v171 = vpop.permute.xlu0 %170
        %vm172 = vcmp.eq.s32.totalorder %v168, %v171
        %v173 = vsel %vm172, %v161, 0.0
        %v174 = vsel %vm157, %v173, 0.0
        %175 = vadd.xlane.f32.xlu0 %v174
        %v176 = vpop.xlane.xlu0 %175
        %v177 = vlog2.pop %v166
        %v178 = vmul.f32 %v177, 0.6931472
        %v179 = vsub.f32 %v178, %v176
        %v180 = vrcp.pop %v166
        %v181 = vmul.f32 %v163, %v180
        %v182 = vmax.f32 %v181, 1e-07
        %v183 = vsel %vm157, %v182, 0.0
        %184 = vadd.xlane.f32.xlu0 %v183
        %v185 = vpop.xlane.xlu0 %184
        %v186 = vmul.f32 %v176, 1.442695
        %v187 = vpow.pop %v186
        %v188 = vmul.f32 %v187, %v180
        %v189 = vmax.f32 %v188, 1e-07
        %v190 = vsub.f32 %v185, %v189
        %v191 = vmul.f32 %v190, 9.2103405
        %v192 = vmul.f32 %v179, 0.1
        %v193 = vadd.f32 %v192, %v191
        %v195 = vlaneseq
        %v196 = vshrl.u32 %v195, 7
        %v197 = vsub.s32 %v168, %v196
        %v198 = vrot.slane %v193, %v197
        %vm200 = vcmask 57344
        %201 = vst.msk [vmem:[%s146] sm:$0x1] %vm200, %v198
        %s202 = sand.u32 %s76, 1
        %s203 = scalar_lea.sflag [#allocation3], %s202
        %s204 = sand.u32 %s76, 1
        %s205 = scalar_lea.vmem [#allocation2], %s204
        // Predicated region
        $region29: #{tpu_custom_call.1} parent=27 // pred_check
          %p206 = pneg %p86
        $region30: #{tpu_custom_call.1} parent=27 // pred_check_branch
          %208 = sbr.rel (%p206) target = $region32
        $region31: #{tpu_custom_call.1} parent=27 // pred_region
          %s210 = ssub.s32 16, 16
          %211 = vsyncadd %s203, %s210
          %s212 = smul.addr %s16, 16
          %s213 = scalar_lea.hbm %s2, %s212
          %s215 = sshll.u32 %s205, 4
          %s216 = int_to_ptr.vmem [resolvable:$true] %s215
          %218 = dma.vmem_to_hbm [thread:$0]  %s216, 16, %s213, %s203
        $region32: #{tpu_custom_call.1} parent=27 // pred_fallthru
          _
      $region28: #{tpu_custom_call.1} parent=5 // pred_fallthru
        _
      %p219 = scmp.le.s32.totalorder 2, %s11
      // Predicated region
      $region33: #{tpu_custom_call.1} parent=5 // pred_check
        %p220 = pneg %p219
      $region34: #{tpu_custom_call.1} parent=5 // pred_check_branch
        %222 = sbr.rel (%p220) target = $region36
      $region35: #{tpu_custom_call.1} parent=5 // pred_region
        %s223 = ssub.s32 %s11, 2
        // Predicated region
        $region37: #{tpu_custom_call.1} parent=35 // pred_check
          %p224 = pneg %p92
        $region38: #{tpu_custom_call.1} parent=35 // pred_check_branch
          %226 = sbr.rel (%p224) target = $region40
        $region39: #{tpu_custom_call.1} parent=35 // pred_region
          %s227 = sand.u32 %s77, 1
          %s228 = scalar_lea.sflag [#allocation3], %s227
          %s229 = sand.u32 %s77, 1
          %s230 = scalar_lea.vmem [#allocation2], %s229
          %231 = dma.done %s228, 16
        $region40: #{tpu_custom_call.1} parent=35 // pred_fallthru
          _
      $region36: #{tpu_custom_call.1} parent=5 // pred_fallthru
        _
    $region6: #{tpu_custom_call.1} parent=1 // loop_footer
      %s15 = sadd.s32 1, %s11
    $region7: #{tpu_custom_call.1} parent=1 // loop_footer_branch
      %10 = sbr.rel target = $region3
    $region8: #{tpu_custom_call.1} parent=1 // loop_exit
      _
    %232 = vsyncpa [#allocation3], 1
    %s233 = scalar_lea.sflag [#allocation3], 1
    %234 = vsyncpa %s233, 1

</llo_original>
